<compile_context>
chip_gen: v5e
topology: v5e:2x2
jax: 0.10.0
libtpu: 0.0.40
codegen_flags: <defaults>
</compile_context>

<pallas_src>
import math

import jax
import jax.numpy as jnp
from jax.experimental import pallas as pl
from jax.experimental.pallas import tpu as pltpu


# --------------------------- Kernel A: focal loss ----------------------------

def _focal_loss_sums(hm_logits, hm_gt):
    """Returns (pos_loss_sum, neg_loss_sum, num_pos) for FocalLoss (_neg_loss)
    with the _sigmoid clamp fused in, tiled + pipelined over the heatmap."""
    n = int(hm_logits.size)
    lanes = 128
    rows = -(-n // lanes)

    def r16(v):
        return ((v + 15) // 16) * 16          # bf16-friendly sublane multiple

    if rows >= 4096:
        tile_rows = 2048                      # big tiles, still >=2 blocks
    elif rows >= 32:
        tile_rows = r16(-(-rows // 2))        # 2 blocks -> both v7x cores get work
    else:
        tile_rows = r16(rows)                 # tiny heatmap: single block
    num_blocks = -(-rows // tile_rows)
    rows_pad = num_blocks * tile_rows
    total = rows_pad * lanes

    x = hm_logits.reshape(-1).astype(jnp.float32)
    g = hm_gt.reshape(-1).astype(jnp.float32)
    if total > n:
        x = jnp.pad(x, (0, total - n))                        # logits tail: 0
        g = jnp.pad(g, (0, total - n), constant_values=2.0)   # gt sentinel > 1
    # bf16 across HBM (kernel is mem-bound on v5e/v6e); arithmetic stays f32.
    x = x.astype(jnp.bfloat16).reshape(rows_pad, lanes)
    g = g.astype(jnp.bfloat16).reshape(rows_pad, lanes)

    log_lo = math.log(1e-4)
    log_hi = math.log(1.0 - 1e-4)

    def kernel(x_ref, gt_ref, out_ref):
        xv = x_ref[...].astype(jnp.float32)                   # (tile_rows, 128)
        gt = gt_ref[...].astype(jnp.float32)

        # overflow-safe sigmoid / log-sigmoid: exp + log + approx-rcp (3 EUP ops).
        a = jnp.abs(xv)
        e = jnp.exp(-a)                                       # <= 1, never overflows
        one_pe = 1.0 + e
        lp1e = jnp.log(one_pe)                                # log(1 + exp(-|x|))
        r = pl.reciprocal(one_pe, approx=True)
        s = jnp.where(xv >= 0.0, r, e * r)                    # sigmoid(x)
        pred = jnp.clip(s, 1e-4, 1.0 - 1e-4)                  # _sigmoid clamp
        omp = 1.0 - pred
        log_pred = jnp.clip(jnp.minimum(xv, 0.0) - lp1e, log_lo, log_hi)
        log_omp = jnp.clip(jnp.minimum(-xv, 0.0) - lp1e, log_lo, log_hi)

        # sentinel padding (gt = 2.0) makes both masks 0 on the padded tail,
        # so no per-element validity mask is needed.
        pos = (gt == 1.0).astype(jnp.float32)
        neg = (gt < 1.0).astype(jnp.float32)
        t1 = 1.0 - gt
        t2 = t1 * t1
        neg_w = t2 * t2                                       # (1-gt)^4, two squarings

        # sublane-only partial reductions; cross-lane sum is done in XLA.
        pos_lanes = jnp.sum(log_pred * omp * omp * pos, axis=0, keepdims=True)
        neg_lanes = jnp.sum(log_omp * pred * pred * neg_w * neg, axis=0,
                            keepdims=True)
        npos_lanes = jnp.sum(pos, axis=0, keepdims=True)

        out_ref[...] = jnp.concatenate(
            [pos_lanes, neg_lanes, npos_lanes,
             jnp.zeros((5, lanes), jnp.float32)], axis=0)[None]

    partials = pl.pallas_call(
        kernel,
        out_shape=jax.ShapeDtypeStruct((num_blocks, 8, lanes), jnp.float32),
        grid=(num_blocks,),
        in_specs=[pl.BlockSpec((tile_rows, lanes), lambda i: (i, 0)),
                  pl.BlockSpec((tile_rows, lanes), lambda i: (i, 0))],
        out_specs=pl.BlockSpec((1, 8, lanes), lambda i: (i, 0, 0)),
        compiler_params=pltpu.CompilerParams(
            dimension_semantics=("parallel",)),
    )(x, g)

    t = jnp.sum(partials, axis=(0, 2))
    return t[0], t[1], t[2]


# ---------------- Kernel B: fused wh/reg/id gather + reductions ---------------

def _pick_hw_tile(hw, ctot, budget_bytes=12 << 20):
    """Largest HW lane-tile whose double-buffered f32 footprint fits the budget,
    constrained to a multiple-of-128 divisor of HW (or HW itself)."""
    max_tile = max(128, budget_bytes // (ctot * 4 * 2))
    if hw <= max_tile:
        return hw
    t = (max_tile // 128) * 128
    while t >= 128:
        if hw % t == 0:
            return t
        t -= 128
    return hw   # fallback: no aligned divisor -> take the full slab


def _fused_reg_id_kd(wh_feat, reg_feat, id_feat, ind, mask, ids, wh_t, reg_t, kd_t):
    """One pallas_call computing, per batch element b, lane-dense partials for
       [wh_l1, off_l1, mask, kd_sq, sel, ce, valid, 0]  (rows of a (1,8,Kp) block).
    Feature maps are streamed per-batch through BlockSpecs (auto pipelined); the
    per-object gather is a blocked one-hot MXU contraction (no manual DMAs)."""
    B, Cwh, H, W = wh_feat.shape
    Creg = reg_feat.shape[1]
    E = id_feat.shape[1]
    HW = H * W
    K = ind.shape[1]

    LANES = 128
    Kp = ((K + LANES - 1) // LANES) * LANES     # lane-dense object axis
    kpad = Kp - K

    # Per-object tensors, K on lanes; padded lanes are masked out everywhere.
    ind_p = jnp.pad(ind.astype(jnp.int32), ((0, 0), (0, kpad)),
                    constant_values=-1).reshape(B, 1, Kp)
    mask_p = jnp.pad(mask.astype(jnp.float32), ((0, 0), (0, kpad))).reshape(B, 1, Kp)
    ids_p = jnp.pad(ids.astype(jnp.int32), ((0, 0), (0, kpad)),
                    constant_values=-1).reshape(B, 1, Kp)
    wh_tT = jnp.pad(jnp.transpose(wh_t, (0, 2, 1)).astype(jnp.float32),
                    ((0, 0), (0, 0), (0, kpad)))
    reg_tT = jnp.pad(jnp.transpose(reg_t, (0, 2, 1)).astype(jnp.float32),
                     ((0, 0), (0, 0), (0, kpad)))
    kd_tT = jnp.pad(jnp.transpose(kd_t, (0, 2, 1)).astype(jnp.float32),
                    ((0, 0), (0, 0), (0, kpad)))

    # Contiguous NCHW -> (B, C, HW): free reshape, no transpose copy.
    wh_hw = wh_feat.reshape(B, Cwh, HW).astype(jnp.float32)
    reg_hw = reg_feat.reshape(B, Creg, HW).astype(jnp.float32)
    id_hw = id_feat.reshape(B, E, HW).astype(jnp.float32)

    Ctot = Cwh + Creg + E
    hw_tile = _pick_hw_tile(HW, Ctot)
    J = HW // hw_tile
    SUB = 2048                                   # static inner chunk (one-hot temp)

    def kernel(ind_ref, mask_ref, ids_ref, wh_t_ref, reg_t_ref, kd_t_ref,
               wh_ref, reg_ref, id_ref, out_ref, acc_wh, acc_reg, acc_id):
        j = pl.program_id(1)

        @pl.when(j == 0)
        def _():
            acc_wh[...] = jnp.zeros_like(acc_wh)
            acc_reg[...] = jnp.zeros_like(acc_reg)
            acc_id[...] = jnp.zeros_like(acc_id)

        ind_row = ind_ref[0]                     # (1, Kp) int32; -1 on padded lanes
        base = j * hw_tile

        # Static loop over lane sub-chunks: build (cw, Kp) one-hot and gather on MXU.
        for c0 in range(0, hw_tile, SUB):
            cw = min(SUB, hw_tile - c0)
            hw_iota = jax.lax.broadcasted_iota(jnp.int32, (cw, Kp), 0) + (base + c0)
            onehot = (hw_iota == ind_row).astype(jnp.float32)            # (cw, Kp)
            acc_wh[...] += jnp.dot(wh_ref[0, :, c0:c0 + cw], onehot,
                                   preferred_element_type=jnp.float32)
            acc_reg[...] += jnp.dot(reg_ref[0, :, c0:c0 + cw], onehot,
                                    preferred_element_type=jnp.float32)
            acc_id[...] += jnp.dot(id_ref[0, :, c0:c0 + cw], onehot,
                                   preferred_element_type=jnp.float32)

        @pl.when(j == J - 1)
        def _():
            mk = mask_ref[0]                                  # (1, Kp)
            sel = (mk > 0.0).astype(jnp.float32)              # reg_mask > 0 rows
            idv = ids_ref[0]                                  # (1, Kp) int32

            wh_pred = acc_wh[...]                             # (Cwh, Kp)
            reg_pred = acc_reg[...]                           # (Creg, Kp)
            idh = acc_id[...]                                 # (E, Kp)

            # RegL1Loss partial sums (size_average=False numerator; mask for denom).
            wh_l1 = jnp.sum(jnp.abs(wh_pred * mk - wh_t_ref[0] * mk),
                            axis=0, keepdims=True)
            off_l1 = jnp.sum(jnp.abs(reg_pred * mk - reg_t_ref[0] * mk),
                             axis=0, keepdims=True)

            # KD loss: MSELoss(reduction='mean') over selected rows.
            kd_sq = jnp.sum((idh - kd_t_ref[0]) ** 2, axis=0, keepdims=True) * sel

            # gt_IDLoss: CrossEntropyLoss(ignore_index=-1) on the raw id head.
            valid = sel * (idv >= 0).astype(jnp.float32)
            zmax = jnp.max(idh, axis=0, keepdims=True)
            z = idh - zmax
            lse = jnp.log(jnp.sum(jnp.exp(z), axis=0, keepdims=True))    # (1, Kp)
            cls_iota = jax.lax.broadcasted_iota(jnp.int32, (E, Kp), 0)
            tgt_logit = jnp.sum(jnp.where(idv == cls_iota, z, 0.0),
                                axis=0, keepdims=True)
            ce = (lse - tgt_logit) * valid

            out_ref[...] = jnp.concatenate(
                [wh_l1, off_l1, mk, kd_sq, sel, ce, valid, jnp.zeros_like(mk)],
                axis=0)[None]

    parts = pl.pallas_call(
        kernel,
        out_shape=jax.ShapeDtypeStruct((B, 8, Kp), jnp.float32),
        grid=(B, J),
        in_specs=[
            pl.BlockSpec((1, 1, Kp), lambda b, j: (b, 0, 0)),      # ind (vector)
            pl.BlockSpec((1, 1, Kp), lambda b, j: (b, 0, 0)),      # reg_mask
            pl.BlockSpec((1, 1, Kp), lambda b, j: (b, 0, 0)),      # ids
            pl.BlockSpec((1, Cwh, Kp), lambda b, j: (b, 0, 0)),    # wh target
            pl.BlockSpec((1, Creg, Kp), lambda b, j: (b, 0, 0)),   # reg target
            pl.BlockSpec((1, E, Kp), lambda b, j: (b, 0, 0)),      # kd target
            pl.BlockSpec((1, Cwh, hw_tile), lambda b, j: (b, 0, j)),   # wh map
            pl.BlockSpec((1, Creg, hw_tile), lambda b, j: (b, 0, j)),  # reg map
            pl.BlockSpec((1, E, hw_tile), lambda b, j: (b, 0, j)),     # id map
        ],
        out_specs=pl.BlockSpec((1, 8, Kp), lambda b, j: (b, 0, 0)),
        scratch_shapes=[
            pltpu.VMEM((Cwh, Kp), jnp.float32),
            pltpu.VMEM((Creg, Kp), jnp.float32),
            pltpu.VMEM((E, Kp), jnp.float32),
        ],
        compiler_params=pltpu.CompilerParams(
            dimension_semantics=("parallel", "arbitrary")),
    )(ind_p, mask_p, ids_p, wh_tT, reg_tT, kd_tT, wh_hw, reg_hw, id_hw)

    return jnp.sum(parts, axis=(0, 2))           # (8,) final scalar sums


# ------------------------------ Module port -----------------------------------

class Opt:
    num_stacks = 1
    mse_loss = False
    reg_loss = 'l1'
    dense_wh = False
    norm_wh = False
    cat_spec_wh = False
    kd_loss = 'mse'
    standard_kd = True
    standard_kd_weight = 0.1
    reg_offset = True
    hm_weight = 1.0
    wh_weight = 0.1
    off_weight = 1.0
    id_weight = 1.0
    reid_dim = 32
    nID = 100


class MotKDLossPallas:
    def __init__(self, opt, key):
        self.opt = opt
        self.emb_dim = opt.reid_dim
        self.nID = opt.nID
        # nn.Linear(emb_dim, nID) parameters (defined as in __init__; this
        # particular forward never applies the classifier).
        k1, k2 = jax.random.split(key)
        bound = 1.0 / math.sqrt(self.emb_dim)
        self.classifier_w = jax.random.uniform(k1, (self.nID, self.emb_dim),
                                               jnp.float32, -bound, bound)
        self.classifier_b = jax.random.uniform(k2, (self.nID,),
                                               jnp.float32, -bound, bound)
        self.emb_scale = math.sqrt(2) * math.log(self.nID - 1)
        self.s_det = jnp.full((1,), -1.85, jnp.float32)
        if opt.standard_kd:
            self.s_id = jnp.full((1,), -0.55, jnp.float32)
            self.s_an = jnp.full((1,), -0.4, jnp.float32)
        else:
            self.s_id = jnp.full((1,), -1.05, jnp.float32)

    def forward(self, outputs, outputs_t, batch):
        opt = self.opt
        zero = jnp.float32(0.0)
        hm_loss, wh_loss, off_loss, id_loss, an_loss = zero, zero, zero, zero, zero

        for s in range(opt.num_stacks):
            output = outputs[s]

            # --- heatmap focal loss (sigmoid + clamp fused, tiled/pipelined) ---
            pos_sum, neg_sum, n_pos = _focal_loss_sums(output['hm'], batch['hm'])
            focal = jnp.where(n_pos == 0, -neg_sum, -(pos_sum + neg_sum) / n_pos)
            hm_loss = hm_loss + focal / opt.num_stacks

            # --- fused wh / reg / id-KD gather kernel (single launch) ---
            sums = _fused_reg_id_kd(
                output['wh'], output['reg'], output['id'],
                batch['ind'], batch['reg_mask'], batch['ids'],
                batch['wh'], batch['reg'], outputs_t)
            wh_l1, off_l1, mask_sum = sums[0], sums[1], sums[2]
            kd_sq, sel_sum, ce_sum, valid_sum = sums[3], sums[4], sums[5], sums[6]

            Cwh = output['wh'].shape[1]
            Creg = output['reg'].shape[1]
            E = output['id'].shape[1]

            if opt.wh_weight > 0:
                wh_loss = wh_loss + (wh_l1 / (mask_sum * Cwh + 1e-4)) / opt.num_stacks
            if opt.reg_offset and opt.off_weight > 0:
                off_loss = off_loss + (off_l1 / (mask_sum * Creg + 1e-4)) / opt.num_stacks

            if opt.id_weight > 0:
                kd = kd_sq / (sel_sum * E)        # MSELoss(mean) over selected rows
                ce = ce_sum / valid_sum           # CE(ignore_index=-1)
                if opt.standard_kd:
                    an_loss = an_loss + ce * opt.standard_kd_weight
                    id_loss = id_loss + kd
                else:
                    id_loss = id_loss + kd
                    an_loss = jnp.zeros_like(id_loss)
                # (matches PyTorch exactly, including in-loop rescale behaviour)
                id_loss = opt.id_weight * id_loss
            else:
                id_loss = jnp.zeros_like(off_loss)

        det_loss = (opt.hm_weight * hm_loss + opt.wh_weight * wh_loss +
                    opt.off_weight * off_loss)
        if opt.standard_kd:
            loss = (jnp.exp(-self.s_det) * det_loss +
                    jnp.exp(-self.s_id) * id_loss +
                    jnp.exp(-self.s_an) * an_loss +
                    (self.s_det + self.s_id + self.s_an))
        else:
            loss = (jnp.exp(-self.s_det) * det_loss +
                    jnp.exp(-self.s_id) * id_loss +
                    (self.s_det + self.s_id))
        loss = loss * 0.5
        loss_stats = {'loss': loss, 'hm_loss': hm_loss, 'wh_loss': wh_loss,
                      'off_loss': off_loss, 'id_loss': id_loss, 'an_loss': an_loss}
        return loss, loss_stats


# -------------------------------- Driver ---------------------------------------

if __name__ == "__main__":
    key = jax.random.PRNGKey(0)
    ks = jax.random.split(key, 12)

    B, H, W, K = 2, 16, 16, 8
    C_HM, C_WH, C_REG, E = 1, 2, 2, Opt.reid_dim
    HW = H * W

    # Student network outputs (NCHW, as in PyTorch).
    outputs = [{
        'hm': jax.random.normal(ks[0], (B, C_HM, H, W), jnp.float32),
        'wh': jax.random.normal(ks[1], (B, C_WH, H, W), jnp.float32),
        'reg': jax.random.normal(ks[2], (B, C_REG, H, W), jnp.float32),
        'id': jax.random.normal(ks[3], (B, E, H, W), jnp.float32),
    }]

    # Teacher KD target, row-aligned with (B, K) object slots.
    outputs_t = jax.random.normal(ks[4], (B, K, E), jnp.float32)

    # Ground-truth batch.
    u = jax.random.uniform(ks[5], (B, C_HM, H, W), jnp.float32)
    hm_gt = jnp.where(u > 0.85, jnp.float32(1.0), u * 0.8)   # some exact 1.0 peaks
    reg_mask = (jax.random.uniform(ks[6], (B, K)) > 0.3).astype(jnp.float32)
    reg_mask = reg_mask.at[:, 0].set(1.0)                    # ensure >=1 positive
    ind = jax.random.randint(ks[7], (B, K), 0, HW, jnp.int32)
    ids = jax.random.randint(ks[8], (B, K), -1, E, jnp.int32)
    ids = ids.at[:, 0].set(3)                                # ensure >=1 non-ignored
    batch = {
        'hm': hm_gt,
        'reg_mask': reg_mask,
        'ind': ind,
        'ids': ids,
        'wh': jnp.abs(jax.random.normal(ks[9], (B, K, C_WH), jnp.float32)) * 4.0,
        'reg': jax.random.uniform(ks[10], (B, K, C_REG), jnp.float32),
    }

    module = MotKDLossPallas(Opt(), ks[11])
    loss, stats = module.forward(outputs, outputs_t, batch)
    loss = jax.block_until_ready(loss)
    for v in stats.values():
        jax.block_until_ready(v)
    assert bool(jnp.all(jnp.isfinite(loss)))
    print("KERNEL_OK")
</pallas_src>

<mosaic_0001>
module attributes {stable_mosaic.version = 11 : i64} {
  func.func @kernel(%arg0: i32, %arg1: memref<16x128xbf16, #tpu.memory_space<vmem>>, %arg2: memref<16x128xbf16, #tpu.memory_space<vmem>>, %arg3: memref<1x8x128xf32, #tpu.memory_space<vmem>>) attributes {dimension_semantics = [#tpu.dimension_semantics<parallel>], iteration_bounds = array<i64: 1>, scalar_prefetch = 0 : i64, scratch_operands = 0 : i64, tpu.core_type = #tpu.core_type<tc>, window_params = [{transform_indices = @transform_0, window_bounds = array<i64: 16, 128>}, {transform_indices = @transform_1, window_bounds = array<i64: 16, 128>}, {transform_indices = @transform_2, window_bounds = array<i64: 1, 8, 128>}]} {
    %c0 = arith.constant 0 : index
    %c0_0 = arith.constant 0 : index
    %0 = vector.load %arg1[%c0, %c0_0] : memref<16x128xbf16, #tpu.memory_space<vmem>>, vector<16x128xbf16>
    %1 = arith.extf %0 : vector<16x128xbf16> to vector<16x128xf32>
    %c0_1 = arith.constant 0 : index
    %c0_2 = arith.constant 0 : index
    %2 = vector.load %arg2[%c0_1, %c0_2] : memref<16x128xbf16, #tpu.memory_space<vmem>>, vector<16x128xbf16>
    %3 = arith.extf %2 : vector<16x128xbf16> to vector<16x128xf32>
    %4 = math.absf %1 : vector<16x128xf32>
    %cst = arith.constant 0.000000e+00 : f32
    %5 = vector.broadcast %cst : f32 to vector<16x128xf32>
    %6 = arith.subf %5, %4 : vector<16x128xf32>
    %7 = math.exp %6 : vector<16x128xf32>
    %cst_3 = arith.constant 1.000000e+00 : f32
    %8 = vector.broadcast %cst_3 : f32 to vector<16x128xf32>
    %9 = arith.addf %8, %7 : vector<16x128xf32>
    %10 = math.log %9 : vector<16x128xf32>
    %11 = tpu.reciprocal %9 {approx = true} : vector<16x128xf32> -> vector<16x128xf32>
    %cst_4 = arith.constant 0.000000e+00 : f32
    %12 = vector.broadcast %cst_4 : f32 to vector<16x128xf32>
    %13 = arith.cmpf oge, %1, %12 : vector<16x128xf32>
    %14 = arith.mulf %7, %11 : vector<16x128xf32>
    %15 = arith.select %13, %11, %14 : vector<16x128xi1>, vector<16x128xf32>
    %cst_5 = arith.constant 9.99999974E-5 : f32
    %cst_6 = arith.constant 0.999899983 : f32
    %16 = vector.broadcast %cst_5 : f32 to vector<16x128xf32>
    %17 = arith.maximumf %16, %15 : vector<16x128xf32>
    %18 = vector.broadcast %cst_6 : f32 to vector<16x128xf32>
    %19 = arith.minimumf %18, %17 : vector<16x128xf32>
    %cst_7 = arith.constant 1.000000e+00 : f32
    %20 = vector.broadcast %cst_7 : f32 to vector<16x128xf32>
    %21 = arith.subf %20, %19 : vector<16x128xf32>
    %cst_8 = arith.constant 0.000000e+00 : f32
    %22 = vector.broadcast %cst_8 : f32 to vector<16x128xf32>
    %23 = arith.minimumf %1, %22 : vector<16x128xf32>
    %24 = arith.subf %23, %10 : vector<16x128xf32>
    %cst_9 = arith.constant -9.21034049 : f32
    %cst_10 = arith.constant -1.000050e-04 : f32
    %25 = vector.broadcast %cst_9 : f32 to vector<16x128xf32>
    %26 = arith.maximumf %25, %24 : vector<16x128xf32>
    %27 = vector.broadcast %cst_10 : f32 to vector<16x128xf32>
    %28 = arith.minimumf %27, %26 : vector<16x128xf32>
    %cst_11 = arith.constant 0.000000e+00 : f32
    %29 = vector.broadcast %cst_11 : f32 to vector<16x128xf32>
    %30 = arith.subf %29, %1 : vector<16x128xf32>
    %cst_12 = arith.constant 0.000000e+00 : f32
    %31 = vector.broadcast %cst_12 : f32 to vector<16x128xf32>
    %32 = arith.minimumf %30, %31 : vector<16x128xf32>
    %33 = arith.subf %32, %10 : vector<16x128xf32>
    %cst_13 = arith.constant -9.21034049 : f32
    %cst_14 = arith.constant -1.000050e-04 : f32
    %34 = vector.broadcast %cst_13 : f32 to vector<16x128xf32>
    %35 = arith.maximumf %34, %33 : vector<16x128xf32>
    %36 = vector.broadcast %cst_14 : f32 to vector<16x128xf32>
    %37 = arith.minimumf %36, %35 : vector<16x128xf32>
    %cst_15 = arith.constant 1.000000e+00 : f32
    %38 = vector.broadcast %cst_15 : f32 to vector<16x128xf32>
    %39 = arith.cmpf oeq, %3, %38 : vector<16x128xf32>
    %40 = arith.extui %39 : vector<16x128xi1> to vector<16x128xi32>
    %41 = arith.sitofp %40 : vector<16x128xi32> to vector<16x128xf32>
    %cst_16 = arith.constant 1.000000e+00 : f32
    %42 = vector.broadcast %cst_16 : f32 to vector<16x128xf32>
    %43 = arith.cmpf olt, %3, %42 : vector<16x128xf32>
    %44 = arith.extui %43 : vector<16x128xi1> to vector<16x128xi32>
    %45 = arith.sitofp %44 : vector<16x128xi32> to vector<16x128xf32>
    %cst_17 = arith.constant 1.000000e+00 : f32
    %46 = vector.broadcast %cst_17 : f32 to vector<16x128xf32>
    %47 = arith.subf %46, %3 : vector<16x128xf32>
    %48 = arith.mulf %47, %47 : vector<16x128xf32>
    %49 = arith.mulf %48, %48 : vector<16x128xf32>
    %50 = arith.mulf %28, %21 : vector<16x128xf32>
    %51 = arith.mulf %50, %21 : vector<16x128xf32>
    %52 = arith.mulf %51, %41 : vector<16x128xf32>
    %cst_18 = arith.constant dense<0.000000e+00> : vector<128xf32>
    %53 = vector.multi_reduction <add>, %52, %cst_18 [0] : vector<16x128xf32> to vector<128xf32>
    %54 = vector.shape_cast %53 : vector<128xf32> to vector<1x128xf32>
    %55 = arith.mulf %37, %19 : vector<16x128xf32>
    %56 = arith.mulf %55, %19 : vector<16x128xf32>
    %57 = arith.mulf %56, %49 : vector<16x128xf32>
    %58 = arith.mulf %57, %45 : vector<16x128xf32>
    %cst_19 = arith.constant dense<0.000000e+00> : vector<128xf32>
    %59 = vector.multi_reduction <add>, %58, %cst_19 [0] : vector<16x128xf32> to vector<128xf32>
    %60 = vector.shape_cast %59 : vector<128xf32> to vector<1x128xf32>
    %cst_20 = arith.constant dense<0.000000e+00> : vector<128xf32>
    %61 = vector.multi_reduction <add>, %41, %cst_20 [0] : vector<16x128xf32> to vector<128xf32>
    %62 = vector.shape_cast %61 : vector<128xf32> to vector<1x128xf32>
    %cst_21 = arith.constant 0.000000e+00 : f32
    %63 = vector.broadcast %cst_21 : f32 to vector<5x128xf32>
    %64 = tpu.concatenate %54, %60, %62, %63 in 0 : vector<1x128xf32>, vector<1x128xf32>, vector<1x128xf32>, vector<5x128xf32> -> vector<8x128xf32>
    %65 = vector.shape_cast %64 : vector<8x128xf32> to vector<1x8x128xf32>
    %c0_22 = arith.constant 0 : index
    %c0_23 = arith.constant 0 : index
    %c0_24 = arith.constant 0 : index
    %66 = vector.load %arg3[%c0_22, %c0_23, %c0_24] : memref<1x8x128xf32, #tpu.memory_space<vmem>>, vector<1x8x128xf32>
    tpu.vector_store %arg3[%c0_22, %c0_23, %c0_24], %65 {strides = array<i32>} : memref<1x8x128xf32, #tpu.memory_space<vmem>>, vector<1x8x128xf32>,
    return
  }
  func.func @transform_0(%arg0: i32) -> (i32, i32) {
    %c0_i32 = arith.constant 0 : i32
    %c0_i32_0 = arith.constant 0 : i32
    return %arg0, %c0_i32 : i32, i32
  }
  func.func @transform_1(%arg0: i32) -> (i32, i32) {
    %c0_i32 = arith.constant 0 : i32
    %c0_i32_0 = arith.constant 0 : i32
    return %arg0, %c0_i32 : i32, i32
  }
  func.func @transform_2(%arg0: i32) -> (i32, i32, i32) {
    %c0_i32 = arith.constant 0 : i32
    %c0_i32_0 = arith.constant 0 : i32
    %c0_i32_1 = arith.constant 0 : i32
    return %arg0, %c0_i32, %c0_i32_0 : i32, i32, i32
  }
}

</mosaic_0001>

<llo_original>
// kernel: tpu_custom_call.1
$region0: #{tpu_custom_call.1}
  #allocation0 [shape = 'u32[]', space=smem, size = 0x4, offset = 0x4, fixed_abs, tag = 'smem constant byte address 0x4 - core index']
  #allocation1 [shape = 'u32[72,128]{1,0:T(1,128)}', space=vmem, size = 0x9000, scoped, tag = 'internal scratch']
  %s0 = inlined_call_operand.hbm [shape: bf16[16,128], index: 0, kind: input, shape index: {}]
  %s1 = inlined_call_operand.hbm [shape: bf16[16,128], index: 1, kind: input, shape index: {}]
  %s2 = inlined_call_operand.hbm [shape: f32[1,8,128], index: 2, kind: output, shape index: {}]
  %s3 = sld [smem:[#allocation0]]
  $region26: #{tpu_custom_call.1} parent=0
    _
  %s5 = ssub.s32 1, %s3
  %s6 = scalar_select 0, %s5, %s3
  $region1: #{tpu_custom_call.1} parent=0
    #allocation2 [shape = 'u8[4096]{0}', space=vmem, size = 0x1000, scoped, tag = 'input window, operand 0, single buffered']
    #allocation3 [shape = 's32[1]{0}', space=sflag, size = 0x4, scoped, tag = 'scoped memory for tpu_custom_call.1']
    #allocation4 [shape = 's32[1]{0}', space=sflag, size = 0x4, scoped, tag = 'scoped memory for tpu_custom_call.1']
    #allocation5 [shape = 'u8[4096]{0}', space=vmem, size = 0x1000, scoped, tag = 'input window, operand 1, single buffered']
    #allocation6 [shape = 's32[1]{0}', space=sflag, size = 0x4, scoped, tag = 'scoped memory for tpu_custom_call.1']
    #allocation7 [shape = 'u8[4096]{0}', space=vmem, size = 0x1000, scoped, tag = 'output window, operand 0, single buffered']
    %7 = vsyncpa [#allocation3], 0
    %8 = vsyncpa [#allocation6], 0
    %9 = vsyncpa [#allocation4], 0
    // Predicated region
    $region2: #{tpu_custom_call.1} parent=1 // pred_check
      _
    $region3: #{tpu_custom_call.1} parent=1 // pred_check_branch
      %11 = sbr.rel (0) target = $region5
    $region4: #{tpu_custom_call.1} parent=1 // pred_region
      %13 = vsyncadd [#allocation3], 0
      %s14 = sshll.u32 %s0, 4
      %s15 = int_to_ptr.hbm [resolvable:$true] %s14
      %s16 = sshll.u32 [#allocation2], 4
      %s17 = int_to_ptr.vmem [resolvable:$true] %s16
      %22 = dma.hbm_to_vmem [thread:$0]  %s15, 128, %s17, [#allocation3], 64, 64, 4
    $region5: #{tpu_custom_call.1} parent=1 // pred_fallthru
      _
    // Predicated region
    $region6: #{tpu_custom_call.1} parent=1 // pred_check
      _
    $region7: #{tpu_custom_call.1} parent=1 // pred_check_branch
      %24 = sbr.rel (0) target = $region9
    $region8: #{tpu_custom_call.1} parent=1 // pred_region
      %26 = vsyncadd [#allocation6], 0
      %s27 = sshll.u32 %s1, 4
      %s28 = int_to_ptr.hbm [resolvable:$true] %s27
      %s29 = sshll.u32 [#allocation5], 4
      %s30 = int_to_ptr.vmem [resolvable:$true] %s29
      %35 = dma.hbm_to_vmem [thread:$0]  %s28, 128, %s30, [#allocation6], 64, 64, 4
    $region9: #{tpu_custom_call.1} parent=1 // pred_fallthru
      _
    // Predicated region
    $region10: #{tpu_custom_call.1} parent=1 // pred_check
      _
    $region11: #{tpu_custom_call.1} parent=1 // pred_check_branch
      %37 = sbr.rel (0) target = $region13
    $region12: #{tpu_custom_call.1} parent=1 // pred_region
      %39 = dma.done [#allocation3], 128
    $region13: #{tpu_custom_call.1} parent=1 // pred_fallthru
      _
    // Predicated region
    $region14: #{tpu_custom_call.1} parent=1 // pred_check
      _
    $region15: #{tpu_custom_call.1} parent=1 // pred_check_branch
      %41 = sbr.rel (0) target = $region17
    $region16: #{tpu_custom_call.1} parent=1 // pred_region
      %43 = dma.done [#allocation6], 128
    $region17: #{tpu_custom_call.1} parent=1 // pred_fallthru
      _
    %v44 = vld [vmem:[#allocation2] sm:$0xf]
    %v45 = vld [vmem:[#allocation2 + $0x4] sm:$0xf]
    %v46 = vunpack.c.l.bf16 %v44
    %v47 = vunpack.c.l.bf16 %v45
    %v48 = vld [vmem:[#allocation5] sm:$0xf]
    %v49 = vld [vmem:[#allocation5 + $0x4] sm:$0xf]
    %v50 = vunpack.c.l.bf16 %v48
    %v51 = vunpack.c.l.bf16 %v49
    %v52 = vand.u32 2147483647, %v46
    %v53 = vand.u32 2147483647, %v47
    %v54 = vsub.f32 0.0, %v52
    %v55 = vsub.f32 0.0, %v53
    %v56 = vmul.f32 %v54, 1.442695
    %v57 = vpow.pop %v56
    %v58 = vmul.f32 %v55, 1.442695
    %v59 = vpow.pop %v58
    %v60 = vadd.f32 %v57, 1.0
    %v61 = vadd.f32 %v59, 1.0
    %v62 = vlog2.pop %v60
    %v63 = vmul.f32 %v62, 0.6931472
    %v64 = vlog2.pop %v61
    %v65 = vmul.f32 %v64, 0.6931472
    %v66 = vrcp.pop %v60
    %v67 = vrcp.pop %v61
    %vm68 = vcmp.ge.f32.partialorder %v46, 0.0
    %vm69 = vcmp.ge.f32.partialorder %v47, 0.0
    %v70 = vmul.f32 %v57, %v66
    %v71 = vmul.f32 %v59, %v67
    %v72 = vsel %vm68, %v66, %v70
    %v73 = vsel %vm69, %v67, %v71
    %v74 = vmax.f32 %v72, 0.0001
    %v75 = vmax.f32 %v73, 0.0001
    %v76 = vmin.f32 %v74, 0.9999
    %v77 = vmin.f32 %v75, 0.9999
    %v78 = vsub.f32 1.0, %v76
    %v79 = vsub.f32 1.0, %v77
    %v80 = vmin.f32 %v46, 0.0
    %v81 = vmin.f32 %v47, 0.0
    %v82 = vsub.f32 %v80, %v63
    %v83 = vsub.f32 %v81, %v65
    %v84 = vmax.f32 %v82, -9.2103405
    %v85 = vmax.f32 %v83, -9.2103405
    %v86 = vmin.f32 %v84, -0.000100005
    %v87 = vmin.f32 %v85, -0.000100005
    %v88 = vsub.f32 0.0, %v46
    %v89 = vsub.f32 0.0, %v47
    %v90 = vmin.f32 %v88, 0.0
    %v91 = vmin.f32 %v89, 0.0
    %v92 = vsub.f32 %v90, %v63
    %v93 = vsub.f32 %v91, %v65
    %v94 = vmax.f32 %v92, -9.2103405
    %v95 = vmax.f32 %v93, -9.2103405
    %v96 = vmin.f32 %v94, -0.000100005
    %v97 = vmin.f32 %v95, -0.000100005
    %vm98 = vcmp.eq.f32.partialorder %v50, 1.0
    %vm99 = vcmp.eq.f32.partialorder %v51, 1.0
    %v100 = vsel %vm98, 1, 0
    %v101 = vsel %vm99, 1, 0
    %v102 = vcvt.s32.f32 %v100
    %v103 = vcvt.s32.f32 %v101
    %vm104 = vcmp.lt.f32.partialorder %v50, 1.0
    %vm105 = vcmp.lt.f32.partialorder %v51, 1.0
    %v106 = vsel %vm104, 1, 0
    %v107 = vsel %vm105, 1, 0
    %v108 = vcvt.s32.f32 %v106
    %v109 = vcvt.s32.f32 %v107
    %v110 = vsub.f32 1.0, %v50
    %v111 = vsub.f32 1.0, %v51
    %v112 = vmul.f32 %v110, %v110
    %v113 = vmul.f32 %v111, %v111
    %v114 = vmul.f32 %v112, %v112
    %v115 = vmul.f32 %v113, %v113
    %v116 = vmul.f32 %v86, %v78
    %v117 = vmul.f32 %v87, %v79
    %v118 = vmul.f32 %v116, %v78
    %v119 = vmul.f32 %v117, %v79
    %v120 = vmul.f32 %v118, %v102
    %v121 = vmul.f32 %v119, %v103
    %v122 = vadd.f32 %v120, %v121
    %v123 = vrot.slane %v122, 4
    %v124 = vadd.f32 %v122, %v123
    %v125 = vrot.slane %v124, 2
    %v126 = vadd.f32 %v124, %v125
    %v127 = vrot.slane %v126, 1
    %v128 = vadd.f32 %v126, %v127
    %v129 = vmul.f32 %v96, %v76
    %v130 = vmul.f32 %v97, %v77
    %v131 = vmul.f32 %v129, %v76
    %v132 = vmul.f32 %v130, %v77
    %v133 = vmul.f32 %v131, %v114
    %v134 = vmul.f32 %v132, %v115
    %v135 = vmul.f32 %v133, %v108
    %v136 = vmul.f32 %v134, %v109
    %v137 = vadd.f32 %v135, %v136
    %v138 = vrot.slane %v137, 4
    %v139 = vadd.f32 %v137, %v138
    %v140 = vrot.slane %v139, 2
    %v141 = vadd.f32 %v139, %v140
    %v142 = vrot.slane %v141, 1
    %v143 = vadd.f32 %v141, %v142
    %v144 = vadd.f32 %v102, %v103
    %v145 = vrot.slane %v144, 4
    %v146 = vadd.f32 %v144, %v145
    %v147 = vrot.slane %v146, 2
    %v148 = vadd.f32 %v146, %v147
    %v149 = vrot.slane %v148, 1
    %v150 = vadd.f32 %v148, %v149
    %vm151 = vcmask 1040384
    %v152 = vsel %vm151, %v128, %v143
    %vm153 = vcmask 1041408
    %v154 = vsel %vm153, %v152, %v150
    %vm155 = vcmask 1042432
    %v156 = vsel %vm155, %v154, 0.0
    %157 = vst [vmem:[#allocation7] sm:$0xff] %v156
    // Predicated region
    $region18: #{tpu_custom_call.1} parent=1 // pred_check
      _
    $region19: #{tpu_custom_call.1} parent=1 // pred_check_branch
      %159 = sbr.rel (0) target = $region21
    $region20: #{tpu_custom_call.1} parent=1 // pred_region
      %161 = vsyncadd [#allocation4], 0
      %s163 = sshll.u32 [#allocation7], 4
      %s164 = int_to_ptr.vmem [resolvable:$true] %s163
      %s165 = sshll.u32 %s2, 4
      %s166 = int_to_ptr.hbm [resolvable:$true] %s165
      %168 = dma.vmem_to_hbm [thread:$0]  %s164, 128, %s166, [#allocation4]
    $region21: #{tpu_custom_call.1} parent=1 // pred_fallthru
      _
    // Predicated region
    $region22: #{tpu_custom_call.1} parent=1 // pred_check
      _
    $region23: #{tpu_custom_call.1} parent=1 // pred_check_branch
      %170 = sbr.rel (0) target = $region25
    $region24: #{tpu_custom_call.1} parent=1 // pred_region
      %172 = dma.done [#allocation4], 128
    $region25: #{tpu_custom_call.1} parent=1 // pred_fallthru
      _
    %173 = vsyncpa [#allocation3], 1
    %174 = vsyncpa [#allocation6], 1
    %175 = vsyncpa [#allocation4], 1

</llo_original>
